<compile_context>
chip_gen: v5e
topology: v5e:2x2
jax: 0.10.0
libtpu: 0.0.40
codegen_flags: <defaults>
</compile_context>

<pallas_src>
import jax
import jax.numpy as jnp
from jax.experimental import pallas as pl
from jax.experimental.pallas import tpu as pltpu


def _qfunc_kernel(xn_ref, xp_ref, xa_ref,
                  w1n_ref, w1p_ref, w1a_ref, b1_ref,
                  w2_ref, b2_ref, w3_ref, b3_ref,
                  q_ref):
    f32 = jnp.float32
    cd = w1n_ref.dtype  # compute dtype (matmul operands only)
    # ---- layer 1: concat fused as three MXU matmuls, f32 accumulation ----
    # Activations are cast in-kernel at the dot operand (no wrapper HBM pass).
    h = jnp.dot(xn_ref[...].astype(cd), w1n_ref[...], preferred_element_type=f32)
    h = h + jnp.dot(xp_ref[...].astype(cd), w1p_ref[...], preferred_element_type=f32)
    h = h + jnp.dot(xa_ref[...].astype(cd), w1a_ref[...], preferred_element_type=f32)
    h = jnp.maximum(h + b1_ref[...], 0.0)
    # ---- layer 2: cast only at the dot input; bias/ReLU stay f32 ----
    h = jnp.dot(h.astype(w2_ref.dtype), w2_ref[...], preferred_element_type=f32)
    h = jnp.maximum(h + b2_ref[...], 0.0)
    # ---- Q head: VPU multiply + lane reduction (Nx1 MXU matmul would be
    # ~1/256 utilized); store the tile lane-dense as a (1, 1, TB) row. ----
    q = jnp.sum(h * w3_ref[...], axis=-1)                    # (TB,)
    q_ref[...] = (q[None, None, :] + b3_ref[...]).astype(q_ref.dtype)


def _round_up(x, m):
    return ((x + m - 1) // m) * m


def qfunction_forward(obs, act, params, *, block_batch=2048,
                      compute_dtype=jnp.float32):
    """obs: {'net': [B, state_dim], 'price': [B, price_dim]}; act: [B, act_dim].
    Returns Q-values of shape (B,)."""
    w1, b1, w2, b2, w3, b3 = params
    x_net, x_price, x_act = obs["net"], obs["price"], act

    B = x_net.shape[0]
    state_dim = x_net.shape[-1]
    price_dim = x_price.shape[-1]
    act_dim = x_act.shape[-1]
    h1 = w1.shape[1]
    h2 = w2.shape[1]

    # Guard against mis-sliced weights producing plausible-but-wrong Q values.
    assert w1.shape[0] == state_dim + price_dim + act_dim, (
        f"w1 rows ({w1.shape[0]}) != state+price+act dims "
        f"({state_dim}+{price_dim}+{act_dim})")

    # Split W1 rows so the obs/act concat happens inside the kernel (no extra
    # HBM pass over a concatenated [B, in_dim] array).
    w1n = w1[:state_dim]
    w1p = w1[state_dim:state_dim + price_dim]
    w1a = w1[state_dim + price_dim:]

    # Cast only the (tiny) weight matmul operands in the wrapper; activations
    # are cast IN-KERNEL (no extra HBM pass). Biases / head stay f32.
    cd = compute_dtype
    w1n, w1p, w1a, w2c = (v.astype(cd) for v in (w1n, w1p, w1a, w2))
    b1 = b1.reshape(1, h1).astype(jnp.float32)
    b2 = b2.reshape(1, h2).astype(jnp.float32)
    w3_row = w3.reshape(1, h2).astype(jnp.float32)   # row layout for VPU head
    b3 = b3.reshape(1, 1).astype(jnp.float32)

    # Batch tiling. The kernel is HBM/overhead-bound, so use large tiles
    # (~2048 rows) for big batches; for B <= 128 use an exact small tile
    # (no OOB reads). For big B, aim for >= 2 tiles so v7x's second
    # TensorCore is not idle.
    if B <= 128:
        TB = _round_up(B, 8)
    else:
        TB = max(128, min(int(block_batch), _round_up(pl.cdiv(B, 2), 128)))
    num_tiles = pl.cdiv(B, TB)

    # NOTE: no jnp.pad of the activations. The ragged last tile's OOB reads
    # are unspecified, which is safe because rows are independent and the
    # final [:B] slice drops the corresponding outputs. Do NOT add any
    # cross-row reduction to this kernel without re-adding masking.

    def rows(feat):          # batch-tiled activation inputs
        return pl.BlockSpec((TB, feat), lambda i: (i, 0))

    def pinned(shape):       # weights/biases resident across all batch tiles
        return pl.BlockSpec(shape, lambda i: (0,) * len(shape))

    q_slab = pl.pallas_call(
        _qfunc_kernel,
        out_shape=jax.ShapeDtypeStruct((num_tiles, 1, TB), jnp.float32),
        grid_spec=pltpu.PrefetchScalarGridSpec(
            num_scalar_prefetch=0,
            grid=(num_tiles,),
            in_specs=[
                rows(state_dim), rows(price_dim), rows(act_dim),
                pinned((state_dim, h1)), pinned((price_dim, h1)),
                pinned((act_dim, h1)), pinned((1, h1)),
                pinned((h1, h2)), pinned((1, h2)),
                pinned((1, h2)), pinned((1, 1)),
            ],
            out_specs=pl.BlockSpec((1, 1, TB), lambda i: (i, 0, 0)),
        ),
        compiler_params=pltpu.CompilerParams(
            # Independent batch tiles -> shard across v7x's 2 TensorCores.
            dimension_semantics=("parallel",),
        ),
    )(x_net, x_price, x_act, w1n, w1p, w1a, b1, w2c, b2, w3_row, b3)

    return q_slab.reshape(num_tiles * TB)[:B]


def init_params(state_dim, price_dim, act_dim, hidden_sizes, key):
    """Deterministic synthetic parameter init (Linear layers of the MLP)."""
    # TODO(synk): the module's `activation` argument is fixed to ReLU here.
    in_dim = state_dim + price_dim + act_dim
    dims = [in_dim] + list(hidden_sizes) + [1]
    params = []
    for d_in, d_out in zip(dims[:-1], dims[1:]):
        kw, kb, key = jax.random.split(key, 3)
        scale = 1.0 / jnp.sqrt(jnp.float32(d_in))
        w = jax.random.uniform(kw, (d_in, d_out), jnp.float32, -scale, scale)
        b = jax.random.uniform(kb, (1, d_out), jnp.float32, -scale, scale)
        params.extend([w, b])
    return tuple(params)


if __name__ == "__main__":
    batch = 8
    state_dim = 16
    price_dim = 8
    act_dim = 4
    hidden_sizes = [32, 32]

    key = jax.random.PRNGKey(0)
    k_net, k_price, k_act, k_params = jax.random.split(key, 4)

    obs = {
        "net": jax.random.normal(k_net, (batch, state_dim), jnp.float32),
        "price": jax.random.normal(k_price, (batch, price_dim), jnp.float32),
    }
    act = jax.random.normal(k_act, (batch, act_dim), jnp.float32)

    params = init_params(state_dim, price_dim, act_dim, hidden_sizes, k_params)

    q = qfunction_forward(obs, act, params)
    q = jax.block_until_ready(q)

    # Pure-JAX reference of the same MLP.
    x = jnp.concatenate([obs["net"], obs["price"], act], axis=-1)
    w1, b1, w2, b2, w3, b3 = params
    ref = jnp.maximum(x @ w1 + b1, 0.0)
    ref = jnp.maximum(ref @ w2 + b2, 0.0)
    ref = jnp.squeeze(ref @ w3 + b3, axis=-1)

    assert q.shape == (batch,)
    # NOTE: with compute_dtype=jnp.bfloat16 this tolerance must be relaxed.
    assert jnp.allclose(q, ref, atol=1e-4, rtol=1e-4)

    print("KERNEL_OK")
</pallas_src>

<mosaic_0001>
module attributes {stable_mosaic.version = 11 : i64} {
  func.func @_qfunc_kernel(%arg0: i32, %arg1: memref<8x16xf32, #tpu.memory_space<vmem>>, %arg2: memref<8x8xf32, #tpu.memory_space<vmem>>, %arg3: memref<8x4xf32, #tpu.memory_space<vmem>>, %arg4: memref<16x32xf32, #tpu.memory_space<vmem>>, %arg5: memref<8x32xf32, #tpu.memory_space<vmem>>, %arg6: memref<4x32xf32, #tpu.memory_space<vmem>>, %arg7: memref<1x32xf32, #tpu.memory_space<vmem>>, %arg8: memref<32x32xf32, #tpu.memory_space<vmem>>, %arg9: memref<1x32xf32, #tpu.memory_space<vmem>>, %arg10: memref<1x32xf32, #tpu.memory_space<vmem>>, %arg11: memref<1x1xf32, #tpu.memory_space<vmem>>, %arg12: memref<1x1x8xf32, #tpu.memory_space<vmem>>) attributes {dimension_semantics = [#tpu.dimension_semantics<parallel>], iteration_bounds = array<i64: 1>, scalar_prefetch = 0 : i64, scratch_operands = 0 : i64, tpu.core_type = #tpu.core_type<tc>, window_params = [{transform_indices = @transform_0, window_bounds = array<i64: 8, 16>}, {transform_indices = @transform_1, window_bounds = array<i64: 8, 8>}, {transform_indices = @transform_2, window_bounds = array<i64: 8, 4>}, {pipeline_mode = #tpu.pipeline_mode<synchronous>, transform_indices = @transform_3, window_bounds = array<i64: 16, 32>}, {pipeline_mode = #tpu.pipeline_mode<synchronous>, transform_indices = @transform_4, window_bounds = array<i64: 8, 32>}, {pipeline_mode = #tpu.pipeline_mode<synchronous>, transform_indices = @transform_5, window_bounds = array<i64: 4, 32>}, {pipeline_mode = #tpu.pipeline_mode<synchronous>, transform_indices = @transform_6, window_bounds = array<i64: 1, 32>}, {pipeline_mode = #tpu.pipeline_mode<synchronous>, transform_indices = @transform_7, window_bounds = array<i64: 32, 32>}, {pipeline_mode = #tpu.pipeline_mode<synchronous>, transform_indices = @transform_8, window_bounds = array<i64: 1, 32>}, {pipeline_mode = #tpu.pipeline_mode<synchronous>, transform_indices = @transform_9, window_bounds = array<i64: 1, 32>}, {pipeline_mode = #tpu.pipeline_mode<synchronous>, transform_indices = @transform_10, window_bounds = array<i64: 1, 1>}, {transform_indices = @transform_11, window_bounds = array<i64: 1, 1, 8>}]} {
    %c0 = arith.constant 0 : index
    %c0_0 = arith.constant 0 : index
    %0 = vector.load %arg1[%c0, %c0_0] : memref<8x16xf32, #tpu.memory_space<vmem>>, vector<8x16xf32>
    %c0_1 = arith.constant 0 : index
    %c0_2 = arith.constant 0 : index
    %1 = vector.load %arg4[%c0_1, %c0_2] : memref<16x32xf32, #tpu.memory_space<vmem>>, vector<16x32xf32>
    %cst = arith.constant dense<0.000000e+00> : vector<8x32xf32>
    %2 = tpu.matmul %0, %1, %cst {dimension_numbers = #tpu.dot_dimension_numbers<[1], [0], [0], [1], [0, 0, 1, 1], [], []>} : vector<8x16xf32>, vector<16x32xf32>, vector<8x32xf32> -> vector<8x32xf32>
    %c0_3 = arith.constant 0 : index
    %c0_4 = arith.constant 0 : index
    %3 = vector.load %arg2[%c0_3, %c0_4] : memref<8x8xf32, #tpu.memory_space<vmem>>, vector<8x8xf32>
    %c0_5 = arith.constant 0 : index
    %c0_6 = arith.constant 0 : index
    %4 = vector.load %arg5[%c0_5, %c0_6] : memref<8x32xf32, #tpu.memory_space<vmem>>, vector<8x32xf32>
    %cst_7 = arith.constant dense<0.000000e+00> : vector<8x32xf32>
    %5 = tpu.matmul %3, %4, %cst_7 {dimension_numbers = #tpu.dot_dimension_numbers<[1], [0], [0], [1], [0, 0, 1, 1], [], []>} : vector<8x8xf32>, vector<8x32xf32>, vector<8x32xf32> -> vector<8x32xf32>
    %6 = arith.addf %2, %5 : vector<8x32xf32>
    %c0_8 = arith.constant 0 : index
    %c0_9 = arith.constant 0 : index
    %7 = vector.load %arg3[%c0_8, %c0_9] : memref<8x4xf32, #tpu.memory_space<vmem>>, vector<8x4xf32>
    %c0_10 = arith.constant 0 : index
    %c0_11 = arith.constant 0 : index
    %8 = vector.load %arg6[%c0_10, %c0_11] : memref<4x32xf32, #tpu.memory_space<vmem>>, vector<4x32xf32>
    %cst_12 = arith.constant dense<0.000000e+00> : vector<8x32xf32>
    %9 = tpu.matmul %7, %8, %cst_12 {dimension_numbers = #tpu.dot_dimension_numbers<[1], [0], [0], [1], [0, 0, 1, 1], [], []>} : vector<8x4xf32>, vector<4x32xf32>, vector<8x32xf32> -> vector<8x32xf32>
    %10 = arith.addf %6, %9 : vector<8x32xf32>
    %c0_13 = arith.constant 0 : index
    %c0_14 = arith.constant 0 : index
    %11 = vector.load %arg7[%c0_13, %c0_14] : memref<1x32xf32, #tpu.memory_space<vmem>>, vector<1x32xf32>
    %12 = vector.broadcast %11 : vector<1x32xf32> to vector<8x32xf32>
    %13 = arith.addf %10, %12 : vector<8x32xf32>
    %cst_15 = arith.constant 0.000000e+00 : f32
    %14 = vector.broadcast %cst_15 : f32 to vector<8x32xf32>
    %15 = arith.maximumf %13, %14 : vector<8x32xf32>
    %c0_16 = arith.constant 0 : index
    %c0_17 = arith.constant 0 : index
    %16 = vector.load %arg8[%c0_16, %c0_17] : memref<32x32xf32, #tpu.memory_space<vmem>>, vector<32x32xf32>
    %cst_18 = arith.constant dense<0.000000e+00> : vector<8x32xf32>
    %17 = tpu.matmul %15, %16, %cst_18 {dimension_numbers = #tpu.dot_dimension_numbers<[1], [0], [0], [1], [0, 0, 1, 1], [], []>} : vector<8x32xf32>, vector<32x32xf32>, vector<8x32xf32> -> vector<8x32xf32>
    %c0_19 = arith.constant 0 : index
    %c0_20 = arith.constant 0 : index
    %18 = vector.load %arg9[%c0_19, %c0_20] : memref<1x32xf32, #tpu.memory_space<vmem>>, vector<1x32xf32>
    %19 = vector.broadcast %18 : vector<1x32xf32> to vector<8x32xf32>
    %20 = arith.addf %17, %19 : vector<8x32xf32>
    %cst_21 = arith.constant 0.000000e+00 : f32
    %21 = vector.broadcast %cst_21 : f32 to vector<8x32xf32>
    %22 = arith.maximumf %20, %21 : vector<8x32xf32>
    %c0_22 = arith.constant 0 : index
    %c0_23 = arith.constant 0 : index
    %23 = vector.load %arg10[%c0_22, %c0_23] : memref<1x32xf32, #tpu.memory_space<vmem>>, vector<1x32xf32>
    %24 = vector.broadcast %23 : vector<1x32xf32> to vector<8x32xf32>
    %25 = arith.mulf %22, %24 : vector<8x32xf32>
    %cst_24 = arith.constant dense<0.000000e+00> : vector<8xf32>
    %26 = vector.multi_reduction <add>, %25, %cst_24 [1] : vector<8x32xf32> to vector<8xf32>
    %27 = vector.shape_cast %26 : vector<8xf32> to vector<1x1x8xf32>
    %c0_25 = arith.constant 0 : index
    %c0_26 = arith.constant 0 : index
    %28 = vector.load %arg11[%c0_25, %c0_26] : memref<1x1xf32, #tpu.memory_space<vmem>>, vector<1x1xf32>
    %29 = vector.shape_cast %28 : vector<1x1xf32> to vector<1x1x1xf32>
    %30 = vector.broadcast %29 : vector<1x1x1xf32> to vector<1x1x8xf32>
    %31 = arith.addf %27, %30 : vector<1x1x8xf32>
    %c0_27 = arith.constant 0 : index
    %c0_28 = arith.constant 0 : index
    %c0_29 = arith.constant 0 : index
    %32 = vector.load %arg12[%c0_27, %c0_28, %c0_29] : memref<1x1x8xf32, #tpu.memory_space<vmem>>, vector<1x1x8xf32>
    tpu.vector_store %arg12[%c0_27, %c0_28, %c0_29], %31 {strides = array<i32>} : memref<1x1x8xf32, #tpu.memory_space<vmem>>, vector<1x1x8xf32>,
    return
  }
  func.func @transform_0(%arg0: i32) -> (i32, i32) {
    %c0_i32 = arith.constant 0 : i32
    %c0_i32_0 = arith.constant 0 : i32
    return %arg0, %c0_i32 : i32, i32
  }
  func.func @transform_1(%arg0: i32) -> (i32, i32) {
    %c0_i32 = arith.constant 0 : i32
    %c0_i32_0 = arith.constant 0 : i32
    return %arg0, %c0_i32 : i32, i32
  }
  func.func @transform_2(%arg0: i32) -> (i32, i32) {
    %c0_i32 = arith.constant 0 : i32
    %c0_i32_0 = arith.constant 0 : i32
    return %arg0, %c0_i32 : i32, i32
  }
  func.func @transform_3(%arg0: i32) -> (i32, i32) {
    %c0_i32 = arith.constant 0 : i32
    %c0_i32_0 = arith.constant 0 : i32
    %c0_i32_1 = arith.constant 0 : i32
    return %c0_i32, %c0_i32_0 : i32, i32
  }
  func.func @transform_4(%arg0: i32) -> (i32, i32) {
    %c0_i32 = arith.constant 0 : i32
    %c0_i32_0 = arith.constant 0 : i32
    %c0_i32_1 = arith.constant 0 : i32
    return %c0_i32, %c0_i32_0 : i32, i32
  }
  func.func @transform_5(%arg0: i32) -> (i32, i32) {
    %c0_i32 = arith.constant 0 : i32
    %c0_i32_0 = arith.constant 0 : i32
    %c0_i32_1 = arith.constant 0 : i32
    return %c0_i32, %c0_i32_0 : i32, i32
  }
  func.func @transform_6(%arg0: i32) -> (i32, i32) {
    %c0_i32 = arith.constant 0 : i32
    %c0_i32_0 = arith.constant 0 : i32
    %c0_i32_1 = arith.constant 0 : i32
    return %c0_i32, %c0_i32_0 : i32, i32
  }
  func.func @transform_7(%arg0: i32) -> (i32, i32) {
    %c0_i32 = arith.constant 0 : i32
    %c0_i32_0 = arith.constant 0 : i32
    %c0_i32_1 = arith.constant 0 : i32
    return %c0_i32, %c0_i32_0 : i32, i32
  }
  func.func @transform_8(%arg0: i32) -> (i32, i32) {
    %c0_i32 = arith.constant 0 : i32
    %c0_i32_0 = arith.constant 0 : i32
    %c0_i32_1 = arith.constant 0 : i32
    return %c0_i32, %c0_i32_0 : i32, i32
  }
  func.func @transform_9(%arg0: i32) -> (i32, i32) {
    %c0_i32 = arith.constant 0 : i32
    %c0_i32_0 = arith.constant 0 : i32
    %c0_i32_1 = arith.constant 0 : i32
    return %c0_i32, %c0_i32_0 : i32, i32
  }
  func.func @transform_10(%arg0: i32) -> (i32, i32) {
    %c0_i32 = arith.constant 0 : i32
    %c0_i32_0 = arith.constant 0 : i32
    %c0_i32_1 = arith.constant 0 : i32
    return %c0_i32, %c0_i32_0 : i32, i32
  }
  func.func @transform_11(%arg0: i32) -> (i32, i32, i32) {
    %c0_i32 = arith.constant 0 : i32
    %c0_i32_0 = arith.constant 0 : i32
    %c0_i32_1 = arith.constant 0 : i32
    return %arg0, %c0_i32, %c0_i32_0 : i32, i32, i32
  }
}

</mosaic_0001>

<llo_original>
// kernel: tpu_custom_call.1
$region0: #{tpu_custom_call.1}
  #allocation0 [shape = 'u32[]', space=smem, size = 0x4, offset = 0x4, fixed_abs, tag = 'smem constant byte address 0x4 - core index']
  #allocation1 [shape = 'u32[72,128]{1,0:T(1,128)}', space=vmem, size = 0x9000, scoped, tag = 'internal scratch']
  #allocation2 [shape = 'f32[1,1]{1,0:T(1,128)S(1)}', space=vmem, size = 0x200, scoped, tag = 'scoped memory for tpu_custom_call.1']
  %s0 = inlined_call_operand.hbm [shape: f32[8,16], index: 0, kind: input, shape index: {}]
  %s1 = inlined_call_operand.hbm [shape: f32[8,8], index: 1, kind: input, shape index: {}]
  %s2 = inlined_call_operand.vmem [shape: f32[8,4], index: 2, kind: input, shape index: {}]
  %s3 = inlined_call_operand.vmem [shape: f32[16,32], index: 3, kind: input, shape index: {}]
  %s4 = inlined_call_operand.hbm [shape: f32[8,32], index: 4, kind: input, shape index: {}]
  %s5 = inlined_call_operand.hbm [shape: f32[4,32], index: 5, kind: input, shape index: {}]
  %s6 = inlined_call_operand.vmem [shape: f32[1,32], index: 6, kind: input, shape index: {}]
  %s7 = inlined_call_operand.hbm [shape: f32[32,32], index: 7, kind: input, shape index: {}]
  %s8 = inlined_call_operand.vmem [shape: f32[1,32], index: 8, kind: input, shape index: {}]
  %s9 = inlined_call_operand.vmem [shape: f32[1,32], index: 9, kind: input, shape index: {}]
  %s10 = inlined_call_operand.<no memory space> [shape: f32[1,1], index: 10, kind: input, shape index: {}]
  %s11 = inlined_call_operand.hbm [shape: f32[1,1,8], index: 11, kind: output, shape index: {}]
  %s12 = sld [smem:[#allocation0]]
  $region74: #{tpu_custom_call.1} parent=0
    _
  %s14 = ssub.s32 1, %s12
  %s15 = scalar_select 0, %s14, %s12
  %v16 = vstv %s10
  %17 = vst [vmem:[#allocation2] sm:$0x1] %v16
  $region1: #{tpu_custom_call.1} parent=0
    #allocation3 [shape = 'u8[4096]{0}', space=vmem, size = 0x1000, scoped, tag = 'input window, operand 0, single buffered']
    #allocation4 [shape = 's32[1]{0}', space=sflag, size = 0x4, scoped, tag = 'scoped memory for tpu_custom_call.1']
    #allocation5 [shape = 's32[1]{0}', space=sflag, size = 0x4, scoped, tag = 'scoped memory for tpu_custom_call.1']
    #allocation6 [shape = 'u8[4096]{0}', space=vmem, size = 0x1000, scoped, tag = 'input window, operand 1, single buffered']
    #allocation7 [shape = 's32[1]{0}', space=sflag, size = 0x4, scoped, tag = 'scoped memory for tpu_custom_call.1']
    #allocation8 [shape = 'u8[4096]{0}', space=vmem, size = 0x1000, scoped, tag = 'input window, operand 4, single buffered']
    #allocation9 [shape = 'u8[2048]{0}', space=vmem, size = 0x800, scoped, tag = 'input window, operand 5, single buffered']
    #allocation10 [shape = 's32[1]{0}', space=sflag, size = 0x4, scoped, tag = 'scoped memory for tpu_custom_call.1']
    #allocation11 [shape = 'u8[16384]{0}', space=vmem, size = 0x4000, scoped, tag = 'input window, operand 7, single buffered']
    #allocation12 [shape = 'u8[512]{0}', space=vmem, size = 0x400, scoped, tag = 'output window, operand 0, single buffered']
    %18 = vsyncpa [#allocation4], 0
    %19 = vsyncpa [#allocation7], 0
    %20 = vsyncpa [#allocation10], 0
    %21 = vsyncpa [#allocation5], 0
    // Predicated region
    $region2: #{tpu_custom_call.1} parent=1 // pred_check
      _
    $region3: #{tpu_custom_call.1} parent=1 // pred_check_branch
      %23 = sbr.rel (0) target = $region5
    $region4: #{tpu_custom_call.1} parent=1 // pred_region
      %25 = vsyncadd [#allocation4], 0
      %s27 = sshll.u32 %s0, 4
      %s28 = int_to_ptr.hbm [resolvable:$true] %s27
      %s29 = sshll.u32 [#allocation3], 4
      %s30 = int_to_ptr.vmem [resolvable:$true] %s29
      %32 = dma.hbm_to_vmem [thread:$0]  %s28, 128, %s30, [#allocation4]
    $region5: #{tpu_custom_call.1} parent=1 // pred_fallthru
      _
    // Predicated region
    $region6: #{tpu_custom_call.1} parent=1 // pred_check
      _
    $region7: #{tpu_custom_call.1} parent=1 // pred_check_branch
      %34 = sbr.rel (0) target = $region9
    $region8: #{tpu_custom_call.1} parent=1 // pred_region
      %36 = vsyncadd [#allocation7], 0
      %s38 = sshll.u32 %s1, 4
      %s39 = int_to_ptr.hbm [resolvable:$true] %s38
      %s40 = sshll.u32 [#allocation6], 4
      %s41 = int_to_ptr.vmem [resolvable:$true] %s40
      %43 = dma.hbm_to_vmem [thread:$0]  %s39, 128, %s41, [#allocation7]
    $region9: #{tpu_custom_call.1} parent=1 // pred_fallthru
      _
    // Predicated region
    $region10: #{tpu_custom_call.1} parent=1 // pred_check
      _
    $region11: #{tpu_custom_call.1} parent=1 // pred_check_branch
      %45 = sbr.rel (0) target = $region13
    $region12: #{tpu_custom_call.1} parent=1 // pred_region
      _
    $region13: #{tpu_custom_call.1} parent=1 // pred_fallthru
      _
    // Predicated region
    $region14: #{tpu_custom_call.1} parent=1 // pred_check
      _
    $region15: #{tpu_custom_call.1} parent=1 // pred_check_branch
      %47 = sbr.rel (0) target = $region17
    $region16: #{tpu_custom_call.1} parent=1 // pred_region
      _
    $region17: #{tpu_custom_call.1} parent=1 // pred_fallthru
      _
    // Predicated region
    $region18: #{tpu_custom_call.1} parent=1 // pred_check
      _
    $region19: #{tpu_custom_call.1} parent=1 // pred_check_branch
      %49 = sbr.rel (0) target = $region21
    $region20: #{tpu_custom_call.1} parent=1 // pred_region
      %51 = vsyncadd [#allocation7], 0
      %s53 = sshll.u32 %s4, 4
      %s54 = int_to_ptr.hbm [resolvable:$true] %s53
      %s55 = sshll.u32 [#allocation8], 4
      %s56 = int_to_ptr.vmem [resolvable:$true] %s55
      %58 = dma.hbm_to_vmem [thread:$0]  %s54, 128, %s56, [#allocation7]
    $region21: #{tpu_custom_call.1} parent=1 // pred_fallthru
      _
    // Predicated region
    $region22: #{tpu_custom_call.1} parent=1 // pred_check
      _
    $region23: #{tpu_custom_call.1} parent=1 // pred_check_branch
      %60 = sbr.rel (0) target = $region25
    $region24: #{tpu_custom_call.1} parent=1 // pred_region
      %62 = vsyncadd [#allocation10], 0
      %s64 = sshll.u32 %s5, 4
      %s65 = int_to_ptr.hbm [resolvable:$true] %s64
      %s66 = sshll.u32 [#allocation9], 4
      %s67 = int_to_ptr.vmem [resolvable:$true] %s66
      %69 = dma.hbm_to_vmem [thread:$0]  %s65, 64, %s67, [#allocation10]
    $region25: #{tpu_custom_call.1} parent=1 // pred_fallthru
      _
    // Predicated region
    $region26: #{tpu_custom_call.1} parent=1 // pred_check
      _
    $region27: #{tpu_custom_call.1} parent=1 // pred_check_branch
      %71 = sbr.rel (0) target = $region29
    $region28: #{tpu_custom_call.1} parent=1 // pred_region
      _
    $region29: #{tpu_custom_call.1} parent=1 // pred_fallthru
      _
    // Predicated region
    $region30: #{tpu_custom_call.1} parent=1 // pred_check
      _
    $region31: #{tpu_custom_call.1} parent=1 // pred_check_branch
      %73 = sbr.rel (0) target = $region33
    $region32: #{tpu_custom_call.1} parent=1 // pred_region
      %75 = vsyncadd [#allocation10], 0
      %s76 = sshll.u32 %s7, 4
      %s77 = int_to_ptr.hbm [resolvable:$true] %s76
      %s78 = sshll.u32 [#allocation11], 4
      %s79 = int_to_ptr.vmem [resolvable:$true] %s78
      %84 = dma.hbm_to_vmem [thread:$0]  %s77, 512, %s79, [#allocation10], 128, 128, 8
    $region33: #{tpu_custom_call.1} parent=1 // pred_fallthru
      _
    // Predicated region
    $region34: #{tpu_custom_call.1} parent=1 // pred_check
      _
    $region35: #{tpu_custom_call.1} parent=1 // pred_check_branch
      %86 = sbr.rel (0) target = $region37
    $region36: #{tpu_custom_call.1} parent=1 // pred_region
      _
    $region37: #{tpu_custom_call.1} parent=1 // pred_fallthru
      _
    // Predicated region
    $region38: #{tpu_custom_call.1} parent=1 // pred_check
      _
    $region39: #{tpu_custom_call.1} parent=1 // pred_check_branch
      %88 = sbr.rel (0) target = $region41
    $region40: #{tpu_custom_call.1} parent=1 // pred_region
      _
    $region41: #{tpu_custom_call.1} parent=1 // pred_fallthru
      _
    // Predicated region
    $region42: #{tpu_custom_call.1} parent=1 // pred_check
      _
    $region43: #{tpu_custom_call.1} parent=1 // pred_check_branch
      %90 = sbr.rel (0) target = $region45
    $region44: #{tpu_custom_call.1} parent=1 // pred_region
      _
    $region45: #{tpu_custom_call.1} parent=1 // pred_fallthru
      _
    // Predicated region
    $region46: #{tpu_custom_call.1} parent=1 // pred_check
      _
    $region47: #{tpu_custom_call.1} parent=1 // pred_check_branch
      %92 = sbr.rel (0) target = $region49
    $region48: #{tpu_custom_call.1} parent=1 // pred_region
      %94 = dma.done [#allocation4], 128
    $region49: #{tpu_custom_call.1} parent=1 // pred_fallthru
      _
    // Predicated region
    $region50: #{tpu_custom_call.1} parent=1 // pred_check
      _
    $region51: #{tpu_custom_call.1} parent=1 // pred_check_branch
      %96 = sbr.rel (0) target = $region53
    $region52: #{tpu_custom_call.1} parent=1 // pred_region
      %98 = dma.done [#allocation7], 128
    $region53: #{tpu_custom_call.1} parent=1 // pred_fallthru
      _
    // Predicated region
    $region54: #{tpu_custom_call.1} parent=1 // pred_check
      _
    $region55: #{tpu_custom_call.1} parent=1 // pred_check_branch
      %100 = sbr.rel (0) target = $region57
    $region56: #{tpu_custom_call.1} parent=1 // pred_region
      %102 = dma.done [#allocation7], 128
    $region57: #{tpu_custom_call.1} parent=1 // pred_fallthru
      _
    // Predicated region
    $region58: #{tpu_custom_call.1} parent=1 // pred_check
      _
    $region59: #{tpu_custom_call.1} parent=1 // pred_check_branch
      %104 = sbr.rel (0) target = $region61
    $region60: #{tpu_custom_call.1} parent=1 // pred_region
      %106 = dma.done [#allocation10], 64
    $region61: #{tpu_custom_call.1} parent=1 // pred_fallthru
      _
    // Predicated region
    $region62: #{tpu_custom_call.1} parent=1 // pred_check
      _
    $region63: #{tpu_custom_call.1} parent=1 // pred_check_branch
      %108 = sbr.rel (0) target = $region65
    $region64: #{tpu_custom_call.1} parent=1 // pred_region
      %110 = dma.done [#allocation10], 512
    $region65: #{tpu_custom_call.1} parent=1 // pred_fallthru
      _
    %v111 = vld [vmem:[#allocation3] sm:$0xff]
    %v112 = vld [vmem:[%s3] sm:$0xff]
    %v113 = vld [vmem:[%s3 + $0x8] sm:$0xff]
    %v114 = vld [vmem:[#allocation6] sm:$0xff]
    %v115 = vld [vmem:[#allocation8] sm:$0xff]
    %vm116 = vcmask 64512
    %v118 = vsel %vm116, %v114, 0
    %120 = vmatpush.msra.mxu0 0.0
    %121 = vmatpush.msra.mxu0 0.0
    %122 = vmatpush.msra.mxu0 0.0
    %123 = vmatpush.msra.mxu0 0.0
    %124 = vmatpush.msra.mxu0 0.0
    %125 = vmatpush.msra.mxu0 0.0
    %126 = vmatpush.msra.mxu0 0.0
    %127 = vmatpush.msra.mxu0 0.0
    %128 = vmatpush.msra.mxu0 0.0
    %129 = vmatpush.msra.mxu0 0.0
    %130 = vmatpush.msra.mxu0 0.0
    %131 = vmatpush.msra.mxu0 0.0
    %132 = vmatpush.msra.mxu0 0.0
    %133 = vmatpush.msra.mxu0 0.0
    %134 = vmatpush.msra.mxu0 0.0
    %135 = vmatpush.msra.mxu0 %v115
    %136 = vmatmul.f32.gmra.mxu0 %v118
    %v137 = vpop.f32.mrf.mxu0
    %v138 = vadd.f32 0.0, %v137
    %139 = vdwg.mxu0
    %vm140 = vcmask 130048
    %v142 = vsel %vm140, %v111, 0
    %144 = vmatpush.msra.mxu0 0.0
    %145 = vmatpush.msra.mxu0 0.0
    %146 = vmatpush.msra.mxu0 0.0
    %147 = vmatpush.msra.mxu0 0.0
    %148 = vmatpush.msra.mxu0 0.0
    %149 = vmatpush.msra.mxu0 0.0
    %150 = vmatpush.msra.mxu0 0.0
    %151 = vmatpush.msra.mxu0 0.0
    %152 = vmatpush.msra.mxu0 0.0
    %153 = vmatpush.msra.mxu0 0.0
    %154 = vmatpush.msra.mxu0 0.0
    %155 = vmatpush.msra.mxu0 0.0
    %156 = vmatpush.msra.mxu0 0.0
    %157 = vmatpush.msra.mxu0 0.0
    %158 = vmatpush.msra.mxu0 %v113
    %159 = vmatpush.msra.mxu0 %v112
    %160 = vmatmul.f32.gmra.mxu0 %v142
    %v161 = vpop.f32.mrf.mxu0
    %v162 = vadd.f32 %v138, %v161
    %163 = vdwg.mxu0
    %v164 = vld [vmem:[%s2] sm:$0xff]
    %v165 = vld [vmem:[#allocation9] sm:$0xf]
    %vm166 = vcmask 31744
    %v168 = vsel %vm166, %v164, 0
    %vm170 = vcmask 1043456
    %v172 = vsel %vm170, %v165, 0
    %174 = vmatpush.msra.mxu0 0.0
    %175 = vmatpush.msra.mxu0 0.0
    %176 = vmatpush.msra.mxu0 0.0
    %177 = vmatpush.msra.mxu0 0.0
    %178 = vmatpush.msra.mxu0 0.0
    %179 = vmatpush.msra.mxu0 0.0
    %180 = vmatpush.msra.mxu0 0.0
    %181 = vmatpush.msra.mxu0 0.0
    %182 = vmatpush.msra.mxu0 0.0
    %183 = vmatpush.msra.mxu0 0.0
    %184 = vmatpush.msra.mxu0 0.0
    %185 = vmatpush.msra.mxu0 0.0
    %186 = vmatpush.msra.mxu0 0.0
    %187 = vmatpush.msra.mxu0 0.0
    %188 = vmatpush.msra.mxu0 0.0
    %189 = vmatpush.msra.mxu0 %v172
    %190 = vmatmul.f32.gmra.mxu0 %v168
    %v191 = vpop.f32.mrf.mxu0
    %v192 = vadd.f32 0.0, %v191
    %193 = vdwg.mxu0
    %v194 = vadd.f32 %v162, %v192
    %v195 = vld [vmem:[%s6] sm:$0x1]
    %v197 = vperm.slane %v195, 0
    %v199 = vadd.f32 %v194, %v197
    %v200 = vmax.f32 %v199, 0.0
    %v201 = vld [vmem:[#allocation11] sm:$0xff]
    %v202 = vld [vmem:[#allocation11 + $0x8] sm:$0xff]
    %v203 = vld [vmem:[#allocation11 + $0x10] sm:$0xff]
    %v204 = vld [vmem:[#allocation11 + $0x18] sm:$0xff]
    %v205 = vld [vmem:[%s8] sm:$0x1]
    %v207 = vperm.slane %v205, 0
    %vm209 = vcmask 261120
    %v211 = vsel %vm209, %v200, 0
    %213 = vmatpush.msra.mxu0 0.0
    %214 = vmatpush.msra.mxu0 0.0
    %215 = vmatpush.msra.mxu0 0.0
    %216 = vmatpush.msra.mxu0 0.0
    %217 = vmatpush.msra.mxu0 0.0
    %218 = vmatpush.msra.mxu0 0.0
    %219 = vmatpush.msra.mxu0 0.0
    %220 = vmatpush.msra.mxu0 0.0
    %221 = vmatpush.msra.mxu0 0.0
    %222 = vmatpush.msra.mxu0 0.0
    %223 = vmatpush.msra.mxu0 0.0
    %224 = vmatpush.msra.mxu0 0.0
    %225 = vmatpush.msra.mxu0 %v204
    %226 = vmatpush.msra.mxu0 %v203
    %227 = vmatpush.msra.mxu0 %v202
    %228 = vmatpush.msra.mxu0 %v201
    %229 = vmatmul.f32.gmra.mxu0 %v211
    %v230 = vpop.f32.mrf.mxu0
    %v231 = vadd.f32 %v207, %v230
    %232 = vdwg.mxu0
    %v233 = vmax.f32 %v231, 0.0
    %v234 = vld [vmem:[%s9] sm:$0x1]
    %v236 = vperm.slane %v234, 0
    %v238 = vmul.f32 %v233, %v236
    %v239 = vsel %vm209, %v238, 0.0
    %240 = vadd.xlane.f32.xlu0 %v239
    %v241 = vpop.xlane.xlu0 %240
    %v242 = vld [vmem:[#allocation2] sm:$0x1]
    %244 = vset.pattern.permute.xlu0 0
    %245 = vperm.xlu0 %244, %v242
    %v246 = vpop.permute.xlu0 %245
    %v248 = vperm.slane %v246, 0
    %v249 = vadd.f32 %v241, %v248
    %v251 = vlaneseq
    %v252 = vand.u32 %v251, 127
    %v253 = vperm.slane %v249, %v252
    %vm255 = vcmask 57344
    %256 = vst.msk [vmem:[#allocation12] sm:$0x1] %vm255, %v253
    // Predicated region
    $region66: #{tpu_custom_call.1} parent=1 // pred_check
      _
    $region67: #{tpu_custom_call.1} parent=1 // pred_check_branch
      %258 = sbr.rel (0) target = $region69
    $region68: #{tpu_custom_call.1} parent=1 // pred_region
      %260 = vsyncadd [#allocation5], 0
      %s262 = sshll.u32 [#allocation12], 4
      %s263 = int_to_ptr.vmem [resolvable:$true] %s262
      %s264 = sshll.u32 %s11, 4
      %s265 = int_to_ptr.hbm [resolvable:$true] %s264
      %267 = dma.vmem_to_hbm [thread:$0]  %s263, 16, %s265, [#allocation5]
    $region69: #{tpu_custom_call.1} parent=1 // pred_fallthru
      _
    // Predicated region
    $region70: #{tpu_custom_call.1} parent=1 // pred_check
      _
    $region71: #{tpu_custom_call.1} parent=1 // pred_check_branch
      %269 = sbr.rel (0) target = $region73
    $region72: #{tpu_custom_call.1} parent=1 // pred_region
      %271 = dma.done [#allocation5], 16
    $region73: #{tpu_custom_call.1} parent=1 // pred_fallthru
      _
    %272 = vsyncpa [#allocation4], 1
    %273 = vsyncpa [#allocation7], 1
    %274 = vsyncpa [#allocation10], 1
    %275 = vsyncpa [#allocation5], 1

</llo_original>
